<compile_context>
chip_gen: v6e
topology: v6e:2x2x1
jax: 0.10.0
libtpu: 0.0.40
codegen_flags: <defaults>
</compile_context>

<pallas_src>
import jax
import jax.numpy as jnp
from jax.experimental import pallas as pl
from jax.experimental.pallas import tpu as pltpu


def _sumsq_kernel(pred_ref, gt_ref, agt_ref, s1_ref, s2_ref):
    # Tiles are (rows_tile, HW); cast to f32 in VMEM (hidden under the DMA).
    pred = pred_ref[...].astype(jnp.float32)
    d1 = pred - gt_ref[...].astype(jnp.float32)
    d2 = pred - agt_ref[...].astype(jnp.float32)
    # One cross-lane (XLU) reduction per tile; scaling by 0.5*w^2/HW is applied
    # outside the kernel on the reduced (B, J) values.
    s1_ref[...] = jnp.sum(d1 * d1, axis=-1, keepdims=True)
    s2_ref[...] = jnp.sum(d2 * d2, axis=-1, keepdims=True)


def _choose_rows_tile(num_rows, hw, itemsize):
    """Largest multiple-of-8 row tile dividing num_rows within a VMEM budget."""
    # 3 inputs x 2 pipeline buffers x rows_tile x HW x itemsize <= ~8 MiB
    budget = 8 * 1024 * 1024
    max_rows = max(1, budget // (6 * hw * itemsize))
    best = None
    t = 8
    while t <= num_rows:
        if num_rows % t == 0 and t <= max_rows:
            best = t
        t += 8
    if best is None:
        # Small / irregular row counts: single block equal to the full dim
        # (allowed by the (8,128) rule since it equals the array extent).
        best = num_rows
    return best


def joints_triplet_mse_loss(output, target, target_weight, another_target,
                            use_target_weight=True):
    """Equivalent of JointsTripletMSELoss(use_target_weight).forward(...)."""
    B, J, H, W = output.shape
    hw = H * W
    R = B * J

    pred = output.reshape(R, hw)
    gt = target.reshape(R, hw)
    agt = another_target.reshape(R, hw)

    itemsize = max(jnp.dtype(pred.dtype).itemsize,
                   jnp.dtype(gt.dtype).itemsize,
                   jnp.dtype(agt.dtype).itemsize)
    rows_tile = _choose_rows_tile(R, hw, itemsize)
    num_blocks = R // rows_tile

    s1, s2 = pl.pallas_call(
        _sumsq_kernel,
        grid=(num_blocks,),
        out_shape=(jax.ShapeDtypeStruct((R, 1), jnp.float32),
                   jax.ShapeDtypeStruct((R, 1), jnp.float32)),
        in_specs=[
            pl.BlockSpec((rows_tile, hw), lambda r: (r, 0)),
            pl.BlockSpec((rows_tile, hw), lambda r: (r, 0)),
            pl.BlockSpec((rows_tile, hw), lambda r: (r, 0)),
        ],
        out_specs=(
            pl.BlockSpec((rows_tile, 1), lambda r: (r, 0)),
            pl.BlockSpec((rows_tile, 1), lambda r: (r, 0)),
        ),
        compiler_params=pltpu.CompilerParams(
            dimension_semantics=("parallel",)),
    )(pred, gt, agt)

    s1 = s1.reshape(B, J)
    s2 = s2.reshape(B, J)

    # 0.5 * mean_hw((w*(pred-gt))^2) == 0.5 * w^2 / HW * sum_hw((pred-gt)^2)
    if use_target_weight:
        w = target_weight.reshape(B, J).astype(jnp.float32)
        scale = (0.5 / float(hw)) * (w * w)                 # (B, J)
    else:
        scale = jnp.float32(0.5 / float(hw))                # scalar, no ones() alloc
    loss = scale * s1                                       # (B, J)
    another_loss = scale * s2                               # (B, J)

    # TODO(synk): the stateful `self.ipc += np.count_nonzero(...)` host counter
    # is a side effect not part of the returned loss; not reproduced.
    trip = jnp.maximum(loss - another_loss, 0.0)            # (B, J)

    per_batch = jnp.mean(loss, axis=1) + jnp.mean(trip, axis=1)  # (B,)
    return jnp.mean(per_batch)


def _reference(output, target, target_weight, another_target,
               use_target_weight=True):
    B, J, H, W = output.shape
    pred = output.reshape(B, J, -1).astype(jnp.float32)
    gt = target.reshape(B, J, -1).astype(jnp.float32)
    agt = another_target.reshape(B, J, -1).astype(jnp.float32)
    if use_target_weight:
        w = target_weight.reshape(B, J, 1).astype(jnp.float32)
    else:
        w = jnp.ones((B, J, 1), dtype=jnp.float32)
    L = 0.5 * jnp.mean((pred * w - gt * w) ** 2, axis=-1)
    A = 0.5 * jnp.mean((pred * w - agt * w) ** 2, axis=-1)
    trip = jnp.maximum(L - A, 0.0)
    return jnp.mean(jnp.mean(L, axis=1) + jnp.mean(trip, axis=1))


if __name__ == "__main__":
    B, J, H, W = 2, 4, 16, 16
    key = jax.random.PRNGKey(0)
    k1, k2, k3, k4 = jax.random.split(key, 4)
    output = jax.random.normal(k1, (B, J, H, W), dtype=jnp.float32)
    target = jax.random.normal(k2, (B, J, H, W), dtype=jnp.float32)
    another_target = jax.random.normal(k3, (B, J, H, W), dtype=jnp.float32)
    target_weight = jax.random.uniform(k4, (B, J, 1), dtype=jnp.float32)

    result = joints_triplet_mse_loss(
        output, target, target_weight, another_target, use_target_weight=True)
    result = jax.block_until_ready(result)
    ref = _reference(
        output, target, target_weight, another_target, use_target_weight=True)
    assert jnp.allclose(result, ref, rtol=1e-5, atol=1e-6), (result, ref)

    # No-weight path (no ones() materialization, scalar scale).
    result_nw = joints_triplet_mse_loss(
        output, target, target_weight, another_target, use_target_weight=False)
    result_nw = jax.block_until_ready(result_nw)
    ref_nw = _reference(
        output, target, target_weight, another_target, use_target_weight=False)
    assert jnp.allclose(result_nw, ref_nw, rtol=1e-5, atol=1e-6), (result_nw, ref_nw)

    print("KERNEL_OK")
</pallas_src>

<mosaic_0001>
module attributes {stable_mosaic.version = 11 : i64} {
  func.func @_sumsq_kernel(%arg0: i32, %arg1: memref<8x256xf32, #tpu.memory_space<vmem>>, %arg2: memref<8x256xf32, #tpu.memory_space<vmem>>, %arg3: memref<8x256xf32, #tpu.memory_space<vmem>>, %arg4: memref<8x1xf32, #tpu.memory_space<vmem>>, %arg5: memref<8x1xf32, #tpu.memory_space<vmem>>) attributes {dimension_semantics = [#tpu.dimension_semantics<parallel>], iteration_bounds = array<i64: 1>, scalar_prefetch = 0 : i64, scratch_operands = 0 : i64, tpu.core_type = #tpu.core_type<tc>, window_params = [{transform_indices = @transform_0, window_bounds = array<i64: 8, 256>}, {transform_indices = @transform_1, window_bounds = array<i64: 8, 256>}, {transform_indices = @transform_2, window_bounds = array<i64: 8, 256>}, {transform_indices = @transform_3, window_bounds = array<i64: 8, 1>}, {transform_indices = @transform_4, window_bounds = array<i64: 8, 1>}]} {
    %c0 = arith.constant 0 : index
    %c0_0 = arith.constant 0 : index
    %0 = vector.load %arg1[%c0, %c0_0] : memref<8x256xf32, #tpu.memory_space<vmem>>, vector<8x256xf32>
    %c0_1 = arith.constant 0 : index
    %c0_2 = arith.constant 0 : index
    %1 = vector.load %arg2[%c0_1, %c0_2] : memref<8x256xf32, #tpu.memory_space<vmem>>, vector<8x256xf32>
    %2 = arith.subf %0, %1 : vector<8x256xf32>
    %c0_3 = arith.constant 0 : index
    %c0_4 = arith.constant 0 : index
    %3 = vector.load %arg3[%c0_3, %c0_4] : memref<8x256xf32, #tpu.memory_space<vmem>>, vector<8x256xf32>
    %4 = arith.subf %0, %3 : vector<8x256xf32>
    %5 = arith.mulf %2, %2 : vector<8x256xf32>
    %cst = arith.constant dense<0.000000e+00> : vector<8xf32>
    %6 = vector.multi_reduction <add>, %5, %cst [1] : vector<8x256xf32> to vector<8xf32>
    %7 = vector.shape_cast %6 : vector<8xf32> to vector<8x1xf32>
    %c0_5 = arith.constant 0 : index
    %c0_6 = arith.constant 0 : index
    %8 = vector.load %arg4[%c0_5, %c0_6] : memref<8x1xf32, #tpu.memory_space<vmem>>, vector<8x1xf32>
    tpu.vector_store %arg4[%c0_5, %c0_6], %7 {strides = array<i32>} : memref<8x1xf32, #tpu.memory_space<vmem>>, vector<8x1xf32>,
    %9 = arith.mulf %4, %4 : vector<8x256xf32>
    %cst_7 = arith.constant dense<0.000000e+00> : vector<8xf32>
    %10 = vector.multi_reduction <add>, %9, %cst_7 [1] : vector<8x256xf32> to vector<8xf32>
    %11 = vector.shape_cast %10 : vector<8xf32> to vector<8x1xf32>
    %c0_8 = arith.constant 0 : index
    %c0_9 = arith.constant 0 : index
    %12 = vector.load %arg5[%c0_8, %c0_9] : memref<8x1xf32, #tpu.memory_space<vmem>>, vector<8x1xf32>
    tpu.vector_store %arg5[%c0_8, %c0_9], %11 {strides = array<i32>} : memref<8x1xf32, #tpu.memory_space<vmem>>, vector<8x1xf32>,
    return
  }
  func.func @transform_0(%arg0: i32) -> (i32, i32) {
    %c0_i32 = arith.constant 0 : i32
    %c0_i32_0 = arith.constant 0 : i32
    return %arg0, %c0_i32 : i32, i32
  }
  func.func @transform_1(%arg0: i32) -> (i32, i32) {
    %c0_i32 = arith.constant 0 : i32
    %c0_i32_0 = arith.constant 0 : i32
    return %arg0, %c0_i32 : i32, i32
  }
  func.func @transform_2(%arg0: i32) -> (i32, i32) {
    %c0_i32 = arith.constant 0 : i32
    %c0_i32_0 = arith.constant 0 : i32
    return %arg0, %c0_i32 : i32, i32
  }
  func.func @transform_3(%arg0: i32) -> (i32, i32) {
    %c0_i32 = arith.constant 0 : i32
    %c0_i32_0 = arith.constant 0 : i32
    return %arg0, %c0_i32 : i32, i32
  }
  func.func @transform_4(%arg0: i32) -> (i32, i32) {
    %c0_i32 = arith.constant 0 : i32
    %c0_i32_0 = arith.constant 0 : i32
    return %arg0, %c0_i32 : i32, i32
  }
}

</mosaic_0001>

<llo_original>
// kernel: tpu_custom_call.1
$region0: #{tpu_custom_call.1}
  #allocation0 [shape = 'u32[]', space=smem, size = 0x4, offset = 0x4, fixed_abs, tag = 'smem constant byte address 0x4 - core index']
  #allocation1 [shape = 'u32[144,128]{1,0:T(1,128)}', space=vmem, size = 0x12000, scoped, tag = 'internal scratch']
  %s0 = inlined_call_operand.hbm [shape: f32[8,256], index: 0, kind: input, shape index: {}]
  %s1 = inlined_call_operand.hbm [shape: f32[8,256], index: 1, kind: input, shape index: {}]
  %s2 = inlined_call_operand.hbm [shape: f32[8,256], index: 2, kind: input, shape index: {}]
  %s3 = inlined_call_operand.vmem [shape: f32[8,1], index: 3, kind: output, shape index: {0}]
  %s4 = inlined_call_operand.vmem [shape: f32[8,1], index: 4, kind: output, shape index: {1}]
  %5 = xla_tuple %s3, %s4
  %s6 = sld [smem:[#allocation0]]
  $region42: #{tpu_custom_call.1} parent=0
    _
  %s8 = ssub.s32 1, %s6
  %s9 = scalar_select 0, %s8, %s6
  $region1: #{tpu_custom_call.1} parent=0
    #allocation2 [shape = 'u8[8192]{0}', space=vmem, size = 0x2000, scoped, tag = 'input window, operand 0, single buffered']
    #allocation3 [shape = 's32[1]{0}', space=sflag, size = 0x4, scoped, tag = 'scoped memory for tpu_custom_call.1']
    #allocation4 [shape = 'u8[8192]{0}', space=vmem, size = 0x2000, scoped, tag = 'input window, operand 1, single buffered']
    #allocation5 [shape = 's32[1]{0}', space=sflag, size = 0x4, scoped, tag = 'scoped memory for tpu_custom_call.1']
    #allocation6 [shape = 'u8[8192]{0}', space=vmem, size = 0x2000, scoped, tag = 'input window, operand 2, single buffered']
    %10 = vsyncpa [#allocation3], 0
    %11 = vsyncpa [#allocation5], 0
    // Predicated region
    $region2: #{tpu_custom_call.1} parent=1 // pred_check
      _
    $region3: #{tpu_custom_call.1} parent=1 // pred_check_branch
      %13 = sbr.rel (0) target = $region5
    $region4: #{tpu_custom_call.1} parent=1 // pred_region
      %s15 = ssub.s32 256, 256
      %16 = vsyncadd [#allocation3], %s15
      %s18 = sshll.u32 [#allocation2], 4
      %s19 = int_to_ptr.vmem [resolvable:$true] %s18
      %21 = dma.hbm_to_vmem [thread:$0]  %s0, 256, %s19, [#allocation3]
    $region5: #{tpu_custom_call.1} parent=1 // pred_fallthru
      _
    // Predicated region
    $region6: #{tpu_custom_call.1} parent=1 // pred_check
      _
    $region7: #{tpu_custom_call.1} parent=1 // pred_check_branch
      %23 = sbr.rel (0) target = $region9
    $region8: #{tpu_custom_call.1} parent=1 // pred_region
      %s25 = ssub.s32 256, 256
      %26 = vsyncadd [#allocation5], %s25
      %s28 = sshll.u32 [#allocation4], 4
      %s29 = int_to_ptr.vmem [resolvable:$true] %s28
      %31 = dma.hbm_to_vmem [thread:$0]  %s1, 256, %s29, [#allocation5]
    $region9: #{tpu_custom_call.1} parent=1 // pred_fallthru
      _
    // Predicated region
    $region10: #{tpu_custom_call.1} parent=1 // pred_check
      _
    $region11: #{tpu_custom_call.1} parent=1 // pred_check_branch
      %33 = sbr.rel (0) target = $region13
    $region12: #{tpu_custom_call.1} parent=1 // pred_region
      %s35 = ssub.s32 256, 256
      %36 = vsyncadd [#allocation5], %s35
      %s38 = sshll.u32 [#allocation6], 4
      %s39 = int_to_ptr.vmem [resolvable:$true] %s38
      %41 = dma.hbm_to_vmem [thread:$0]  %s2, 256, %s39, [#allocation5]
    $region13: #{tpu_custom_call.1} parent=1 // pred_fallthru
      _
    // Predicated region
    $region14: #{tpu_custom_call.1} parent=1 // pred_check
      _
    $region15: #{tpu_custom_call.1} parent=1 // pred_check_branch
      %43 = sbr.rel (0) target = $region17
    $region16: #{tpu_custom_call.1} parent=1 // pred_region
      %44 = dma.done [#allocation3], 256
    $region17: #{tpu_custom_call.1} parent=1 // pred_fallthru
      _
    // Predicated region
    $region18: #{tpu_custom_call.1} parent=1 // pred_check
      _
    $region19: #{tpu_custom_call.1} parent=1 // pred_check_branch
      %46 = sbr.rel (0) target = $region21
    $region20: #{tpu_custom_call.1} parent=1 // pred_region
      %47 = dma.done [#allocation5], 256
    $region21: #{tpu_custom_call.1} parent=1 // pred_fallthru
      _
    // Predicated region
    $region22: #{tpu_custom_call.1} parent=1 // pred_check
      _
    $region23: #{tpu_custom_call.1} parent=1 // pred_check_branch
      %49 = sbr.rel (0) target = $region25
    $region24: #{tpu_custom_call.1} parent=1 // pred_region
      %50 = dma.done [#allocation5], 256
    $region25: #{tpu_custom_call.1} parent=1 // pred_fallthru
      _
    %v51 = vld [vmem:[#allocation2] sm:$0xff]
    %v52 = vld [vmem:[#allocation2 + $0x8] sm:$0xff]
    %v53 = vld [vmem:[#allocation4] sm:$0xff]
    %v54 = vld [vmem:[#allocation4 + $0x8] sm:$0xff]
    %v55 = vsub.f32 %v51, %v53
    %v56 = vsub.f32 %v52, %v54
    %v57 = vld [vmem:[#allocation6] sm:$0xff]
    %v58 = vld [vmem:[#allocation6 + $0x8] sm:$0xff]
    %v59 = vsub.f32 %v51, %v57
    %v60 = vsub.f32 %v52, %v58
    %v61 = vmul.f32 %v55, %v55
    %v62 = vmul.f32 %v56, %v56
    %v63 = vadd.f32 %v61, %v62
    %64 = vadd.xlane.f32.xlu0 %v63
    %v65 = vpop.xlane.xlu0 %64
    %vm66 = vcmask 7168
    %67 = vst.msk [vmem:[%s3] sm:$0xff] %vm66, %v65
    %v68 = vmul.f32 %v59, %v59
    %v69 = vmul.f32 %v60, %v60
    %v70 = vadd.f32 %v68, %v69
    %71 = vadd.xlane.f32.xlu0 %v70
    %v72 = vpop.xlane.xlu0 %71
    %73 = vst.msk [vmem:[%s4] sm:$0xff] %vm66, %v72
    // Predicated region
    $region26: #{tpu_custom_call.1} parent=1 // pred_check
      _
    $region27: #{tpu_custom_call.1} parent=1 // pred_check_branch
      %75 = sbr.rel (0) target = $region29
    $region28: #{tpu_custom_call.1} parent=1 // pred_region
      _
    $region29: #{tpu_custom_call.1} parent=1 // pred_fallthru
      _
    // Predicated region
    $region30: #{tpu_custom_call.1} parent=1 // pred_check
      _
    $region31: #{tpu_custom_call.1} parent=1 // pred_check_branch
      %77 = sbr.rel (0) target = $region33
    $region32: #{tpu_custom_call.1} parent=1 // pred_region
      _
    $region33: #{tpu_custom_call.1} parent=1 // pred_fallthru
      _
    // Predicated region
    $region34: #{tpu_custom_call.1} parent=1 // pred_check
      _
    $region35: #{tpu_custom_call.1} parent=1 // pred_check_branch
      %79 = sbr.rel (0) target = $region37
    $region36: #{tpu_custom_call.1} parent=1 // pred_region
      _
    $region37: #{tpu_custom_call.1} parent=1 // pred_fallthru
      _
    // Predicated region
    $region38: #{tpu_custom_call.1} parent=1 // pred_check
      _
    $region39: #{tpu_custom_call.1} parent=1 // pred_check_branch
      %81 = sbr.rel (0) target = $region41
    $region40: #{tpu_custom_call.1} parent=1 // pred_region
      _
    $region41: #{tpu_custom_call.1} parent=1 // pred_fallthru
      _
    %82 = vsyncpa [#allocation3], 1
    %83 = vsyncpa [#allocation5], 1

</llo_original>
